<compile_context>
chip_gen: v7x
topology: tpu7x:2x2x1
jax: 0.10.0
libtpu: 0.0.40
codegen_flags: <defaults>
</compile_context>

<pallas_src>
import functools

import jax
import jax.numpy as jnp
from jax.experimental import pallas as pl
from jax.experimental.pallas import tpu as pltpu


def _round_up(x, m):
    return (x + m - 1) // m * m


def _pick_lane_tile(dim, max_tile):
    """Largest multiple of 128 <= max_tile that evenly divides round_up(dim, 128)."""
    d = _round_up(dim, 128)
    best = 128
    for cand in range(128, min(d, max_tile) + 1, 128):
        if d % cand == 0:
            best = cand
    return best


def _pick_row_tile(dim, max_tile):
    """Largest multiple of 8 <= max_tile that evenly divides round_up(dim, 8)."""
    d = _round_up(dim, 8)
    best = 8
    for cand in range(8, min(d, max_tile) + 1, 8):
        if d % cand == 0:
            best = cand
    return best


def _temp_scaled_linear_kernel(temp_ref, x_ref, w_ref, b_ref, o_ref, acc_ref):
    # temp_ref: SMEM (1,) f32      -- the temperature parameter
    # x_ref:    VMEM (tm, tk) bf16 -- activation tile
    # w_ref:    VMEM (tk, tn) bf16 -- weight tile
    # b_ref:    VMEM (1, tn)  f32  -- bias tile
    # o_ref:    VMEM (tm, tn) f32  -- scaled-logits tile
    # acc_ref:  VMEM (tm, tn) f32  -- accumulator, resident across the F axis
    r = pl.program_id(2)

    @pl.when(r == 0)
    def _():
        acc_ref[...] = jnp.zeros_like(acc_ref)

    # MXU: bf16 inputs, f32 accumulation.
    acc_ref[...] += jnp.dot(x_ref[...], w_ref[...],
                            preferred_element_type=jnp.float32)

    @pl.when(r == pl.num_programs(2) - 1)
    def _():
        # Epilogue (once per output tile): + bias, / temperature, store.
        inv_t = 1.0 / temp_ref[0]          # scalar unit; broadcast over the tile
        o_ref[...] = ((acc_ref[...] + b_ref[...]) * inv_t).astype(o_ref.dtype)


@functools.partial(jax.jit, static_argnames=())
def model_with_temperature_forward(x_nchw, w, b, temperature):
    """Forward of ModelWithTemperature with a linear wrapped model.

    x_nchw:      (N, C, H, W) float32
    w:           (C*H*W, K)   float32
    b:           (K,)         float32
    temperature: (1,)         float32  (nn.Parameter, init 1.5)
    returns:     (N, K)       float32  scaled logits  (model(x) / temperature)
    """
    n = x_nchw.shape[0]
    f, k = w.shape

    # Glue: flatten NCHW -> (N, F), row-major like torch's .view(N, -1).
    x2d = x_nchw.reshape(n, f)

    # Tile sizes: lane/MXU aligned; padded dims are exact multiples of tiles.
    # Caps keep double-buffered tiles well inside the default scoped-VMEM limit.
    tm = _pick_row_tile(n, 256)
    tn = _pick_lane_tile(k, 512)
    tk = _pick_lane_tile(f, 1024)
    n_p = _round_up(n, tm)
    k_p = _round_up(k, tn)
    f_p = _round_up(f, tk)

    # Pad (zeros are neutral for the contraction / sliced off for classes),
    # then cast matmul operands to bf16 to halve HBM traffic.
    xb = jnp.pad(x2d, ((0, n_p - n), (0, f_p - f))).astype(jnp.bfloat16)
    wb = jnp.pad(w, ((0, f_p - f), (0, k_p - k))).astype(jnp.bfloat16)
    b2d = jnp.pad(b, (0, k_p - k)).reshape(1, k_p).astype(jnp.float32)
    t = temperature.astype(jnp.float32).reshape(1)

    grid = (n_p // tm, k_p // tn, f_p // tk)   # reduction axis last

    out_p = pl.pallas_call(
        _temp_scaled_linear_kernel,
        out_shape=jax.ShapeDtypeStruct((n_p, k_p), jnp.float32),
        grid_spec=pltpu.PrefetchScalarGridSpec(
            num_scalar_prefetch=0,
            grid=grid,
            in_specs=[
                pl.BlockSpec(memory_space=pltpu.SMEM),             # temperature
                pl.BlockSpec((tm, tk), lambda i, j, r: (i, r)),    # activations
                pl.BlockSpec((tk, tn), lambda i, j, r: (r, j)),    # weight
                pl.BlockSpec((1, tn), lambda i, j, r: (0, j)),     # bias
            ],
            out_specs=pl.BlockSpec((tm, tn), lambda i, j, r: (i, j)),
            scratch_shapes=[pltpu.VMEM((tm, tn), jnp.float32)],
        ),
        compiler_params=pltpu.CompilerParams(
            dimension_semantics=("parallel", "parallel", "arbitrary")),
    )(t, xb, wb, b2d)

    # Slice the padding back off.
    return out_p[:n, :k]


if __name__ == "__main__":
    key = jax.random.PRNGKey(0)
    k_x, k_w, k_b = jax.random.split(key, 3)

    # Small TinyImageNet-flavoured shapes (NCHW input, 200 classes).
    N, C, H, W = 8, 3, 16, 16
    F = C * H * W                     # 768 flattened features
    K = 200                           # classes (not lane-aligned -> padded to 256)

    x = jax.random.normal(k_x, (N, C, H, W), dtype=jnp.float32)
    w = jax.random.normal(k_w, (F, K), dtype=jnp.float32) * 0.05
    b = jax.random.normal(k_b, (K,), dtype=jnp.float32) * 0.1

    # nn.Parameter(torch.ones(1) * 1.5)
    temperature = jnp.ones((1,), dtype=jnp.float32) * 1.5

    out = model_with_temperature_forward(x, w, b, temperature)
    out = jax.block_until_ready(out)
    assert out.shape == (N, K)

    # Reference with matching bf16 operands (f32 accumulation), then /T.
    x2d = x.reshape(N, F)
    ref = (jnp.dot(x2d.astype(jnp.bfloat16), w.astype(jnp.bfloat16),
                   preferred_element_type=jnp.float32) + b) / temperature[0]
    assert jnp.allclose(out, ref, atol=1e-3, rtol=1e-3), "mismatch vs bf16 reference"

    # Loose check vs full-f32 PyTorch-semantics reference (bf16 input rounding).
    ref_f32 = (x2d @ w + b) / temperature[0]
    assert jnp.allclose(out, ref_f32, atol=5e-2, rtol=5e-2), "mismatch vs f32 reference"

    print("KERNEL_OK")
</pallas_src>

<mosaic_0001>
module attributes {stable_mosaic.version = 11 : i64} {
  func.func @_temp_scaled_linear_kernel(%arg0: i32, %arg1: i32, %arg2: i32, %arg3: memref<1xf32, #tpu.memory_space<smem>>, %arg4: memref<8x768xbf16, #tpu.memory_space<vmem>>, %arg5: memref<768x256xbf16, #tpu.memory_space<vmem>>, %arg6: memref<1x256xf32, #tpu.memory_space<vmem>>, %arg7: memref<8x256xf32, #tpu.memory_space<vmem>>, %arg8: memref<8x256xf32, #tpu.memory_space<vmem>>) attributes {dimension_semantics = [#tpu.dimension_semantics<parallel>, #tpu.dimension_semantics<parallel>, #tpu.dimension_semantics<arbitrary>], iteration_bounds = array<i64: 1, 1, 1>, scalar_prefetch = 0 : i64, scratch_operands = 1 : i64, tpu.core_type = #tpu.core_type<tc>, window_params = [{transform_indices = @transform_0, window_bounds = array<i64: 1>}, {transform_indices = @transform_1, window_bounds = array<i64: 8, 768>}, {transform_indices = @transform_2, window_bounds = array<i64: 768, 256>}, {transform_indices = @transform_3, window_bounds = array<i64: 1, 256>}, {transform_indices = @transform_4, window_bounds = array<i64: 8, 256>}]} {
    %c0_i32 = arith.constant 0 : i32
    %0 = arith.cmpi eq, %arg2, %c0_i32 : i32
    %1 = arith.extui %0 : i1 to i32
    %c0_i32_0 = arith.constant 0 : i32
    %2 = arith.cmpi ne, %1, %c0_i32_0 : i32
    scf.if %2 {
      %cst_10 = arith.constant 0.000000e+00 : f32
      %12 = vector.broadcast %cst_10 : f32 to vector<8x256xf32>
      %c0_11 = arith.constant 0 : index
      %c0_12 = arith.constant 0 : index
      %13 = vector.load %arg8[%c0_11, %c0_12] : memref<8x256xf32, #tpu.memory_space<vmem>>, vector<8x256xf32>
      tpu.vector_store %arg8[%c0_11, %c0_12], %12 {strides = array<i32>} : memref<8x256xf32, #tpu.memory_space<vmem>>, vector<8x256xf32>,
    } else {
    }
    %c0 = arith.constant 0 : index
    %c0_1 = arith.constant 0 : index
    %3 = vector.load %arg8[%c0, %c0_1] : memref<8x256xf32, #tpu.memory_space<vmem>>, vector<8x256xf32>
    %c0_2 = arith.constant 0 : index
    %c0_3 = arith.constant 0 : index
    %4 = vector.load %arg4[%c0_2, %c0_3] : memref<8x768xbf16, #tpu.memory_space<vmem>>, vector<8x768xbf16>
    %c0_4 = arith.constant 0 : index
    %c0_5 = arith.constant 0 : index
    %5 = vector.load %arg5[%c0_4, %c0_5] : memref<768x256xbf16, #tpu.memory_space<vmem>>, vector<768x256xbf16>
    %cst = arith.constant dense<0.000000e+00> : vector<8x256xf32>
    %6 = tpu.matmul %4, %5, %cst {dimension_numbers = #tpu.dot_dimension_numbers<[1], [0], [0], [1], [0, 0, 1, 1], [], []>} : vector<8x768xbf16>, vector<768x256xbf16>, vector<8x256xf32> -> vector<8x256xf32>
    %7 = arith.addf %3, %6 : vector<8x256xf32>
    %c0_6 = arith.constant 0 : index
    %c0_7 = arith.constant 0 : index
    %8 = vector.load %arg8[%c0_6, %c0_7] : memref<8x256xf32, #tpu.memory_space<vmem>>, vector<8x256xf32>
    tpu.vector_store %arg8[%c0_6, %c0_7], %7 {strides = array<i32>} : memref<8x256xf32, #tpu.memory_space<vmem>>, vector<8x256xf32>,
    %c0_i32_8 = arith.constant 0 : i32
    %9 = arith.cmpi eq, %arg2, %c0_i32_8 : i32
    %10 = arith.extui %9 : i1 to i32
    %c0_i32_9 = arith.constant 0 : i32
    %11 = arith.cmpi ne, %10, %c0_i32_9 : i32
    scf.if %11 {
      %c0_10 = arith.constant 0 : index
      %12 = memref.load %arg3[%c0_10] : memref<1xf32, #tpu.memory_space<smem>>
      %cst_11 = arith.constant 1.000000e+00 : f32
      %13 = arith.divf %cst_11, %12 : f32
      %c0_12 = arith.constant 0 : index
      %c0_13 = arith.constant 0 : index
      %14 = vector.load %arg8[%c0_12, %c0_13] : memref<8x256xf32, #tpu.memory_space<vmem>>, vector<8x256xf32>
      %c0_14 = arith.constant 0 : index
      %c0_15 = arith.constant 0 : index
      %15 = vector.load %arg6[%c0_14, %c0_15] : memref<1x256xf32, #tpu.memory_space<vmem>>, vector<1x256xf32>
      %16 = vector.broadcast %15 : vector<1x256xf32> to vector<8x256xf32>
      %17 = arith.addf %14, %16 : vector<8x256xf32>
      %18 = vector.broadcast %13 : f32 to vector<8x256xf32>
      %19 = arith.mulf %17, %18 : vector<8x256xf32>
      %c0_16 = arith.constant 0 : index
      %c0_17 = arith.constant 0 : index
      %20 = vector.load %arg7[%c0_16, %c0_17] : memref<8x256xf32, #tpu.memory_space<vmem>>, vector<8x256xf32>
      tpu.vector_store %arg7[%c0_16, %c0_17], %19 {strides = array<i32>} : memref<8x256xf32, #tpu.memory_space<vmem>>, vector<8x256xf32>,
    } else {
    }
    return
  }
  func.func @transform_0(%arg0: i32, %arg1: i32, %arg2: i32) -> i32 {
    %c0_i32 = arith.constant 0 : i32
    %c0_i32_0 = arith.constant 0 : i32
    return %c0_i32 : i32
  }
  func.func @transform_1(%arg0: i32, %arg1: i32, %arg2: i32) -> (i32, i32) {
    %c0_i32 = arith.constant 0 : i32
    return %arg0, %arg2 : i32, i32
  }
  func.func @transform_2(%arg0: i32, %arg1: i32, %arg2: i32) -> (i32, i32) {
    %c0_i32 = arith.constant 0 : i32
    return %arg2, %arg1 : i32, i32
  }
  func.func @transform_3(%arg0: i32, %arg1: i32, %arg2: i32) -> (i32, i32) {
    %c0_i32 = arith.constant 0 : i32
    %c0_i32_0 = arith.constant 0 : i32
    return %c0_i32, %arg1 : i32, i32
  }
  func.func @transform_4(%arg0: i32, %arg1: i32, %arg2: i32) -> (i32, i32) {
    %c0_i32 = arith.constant 0 : i32
    return %arg0, %arg1 : i32, i32
  }
}

</mosaic_0001>

<llo_original>
// kernel: model_with_temperature_forward.1
$region0: #{model_with_temperature_forward.1}
  #allocation0 [shape = 'u32[]', space=smem, size = 0x4, offset = 0x4, fixed_abs, tag = 'smem constant byte address 0x4 - core index']
  #allocation1 [shape = 'u32[144,128]{1,0:T(1,128)}', space=vmem, size = 0x12000, scoped, tag = 'internal scratch']
  #allocation2 [shape = 'f32[8,256]{1,0:T(8,128)}', space=vmem, size = 0x2000, scoped, tag = 'scratch operand']
  #allocation3 [shape = 'f32[1]{0:T(128)S(6)}', space=smem, size = 0x200, scoped, tag = 'scoped memory for model_with_temperature_forward.1']
  %s0 = inlined_call_operand.<no memory space> [shape: f32[1], index: 0, kind: input, shape index: {}]
  %s1 = inlined_call_operand.vmem [shape: bf16[8,768], index: 1, kind: input, shape index: {}]
  %s2 = inlined_call_operand.vmem [shape: bf16[768,256], index: 2, kind: input, shape index: {}]
  %s3 = inlined_call_operand.vmem [shape: f32[1,256], index: 3, kind: input, shape index: {}]
  %s4 = inlined_call_operand.hbm [shape: f32[8,256], index: 4, kind: output, shape index: {}]
  %s5 = sld [smem:[#allocation0]]
  $region34: #{model_with_temperature_forward.1} parent=0
    _
  %s7 = ssub.s32 1, %s5
  %s8 = scalar_select 0, %s7, %s5
  %9 = sst [smem:[#allocation3]] %s0
  $region1: #{model_with_temperature_forward.1} parent=0
    #allocation4 [shape = 'u8[8192]{0}', space=vmem, size = 0x2000, scoped, tag = 'output window, operand 0, single buffered']
    #allocation5 [shape = 's32[1]{0}', space=sflag, size = 0x4, scoped, tag = 'scoped memory for model_with_temperature_forward.1']
    %10 = vsyncpa [#allocation5], 0
    // Predicated region
    $region2: #{model_with_temperature_forward.1} parent=1 // pred_check
      _
    $region3: #{model_with_temperature_forward.1} parent=1 // pred_check_branch
      %12 = sbr.rel (0) target = $region5
    $region4: #{model_with_temperature_forward.1} parent=1 // pred_region
      _
    $region5: #{model_with_temperature_forward.1} parent=1 // pred_fallthru
      _
    // Predicated region
    $region6: #{model_with_temperature_forward.1} parent=1 // pred_check
      _
    $region7: #{model_with_temperature_forward.1} parent=1 // pred_check_branch
      %14 = sbr.rel (0) target = $region9
    $region8: #{model_with_temperature_forward.1} parent=1 // pred_region
      _
    $region9: #{model_with_temperature_forward.1} parent=1 // pred_fallthru
      _
    // Predicated region
    $region10: #{model_with_temperature_forward.1} parent=1 // pred_check
      _
    $region11: #{model_with_temperature_forward.1} parent=1 // pred_check_branch
      %16 = sbr.rel (0) target = $region13
    $region12: #{model_with_temperature_forward.1} parent=1 // pred_region
      _
    $region13: #{model_with_temperature_forward.1} parent=1 // pred_fallthru
      _
    // Predicated region
    $region14: #{model_with_temperature_forward.1} parent=1 // pred_check
      _
    $region15: #{model_with_temperature_forward.1} parent=1 // pred_check_branch
      %18 = sbr.rel (0) target = $region17
    $region16: #{model_with_temperature_forward.1} parent=1 // pred_region
      _
    $region17: #{model_with_temperature_forward.1} parent=1 // pred_fallthru
      _
    %p19 = scmp.eq.s32.totalorder 0, 0
    // Predicated region
    $region18: #{model_with_temperature_forward.1} parent=1 // pred_check
      %p20 = pneg %p19
    $region19: #{model_with_temperature_forward.1} parent=1 // pred_check_branch
      %22 = sbr.rel (%p20) target = $region21
    $region20: #{model_with_temperature_forward.1} parent=1 // pred_region
      %23 = vst [vmem:[#allocation2] sm:$0xff] 0.0
      %24 = vst [vmem:[#allocation2 + $0x8] sm:$0xff] 0.0
    $region21: #{model_with_temperature_forward.1} parent=1 // pred_fallthru
      _
    %v25 = vld [vmem:[#allocation2] sm:$0xff]
    %v26 = vld [vmem:[#allocation2 + $0x8] sm:$0xff]
    %v27 = vld [vmem:[%s1] sm:$0xff]
    %v28 = vld [vmem:[%s1 + $0x8] sm:$0xff]
    %v29 = vld [vmem:[%s1 + $0x10] sm:$0xff]
    %v30 = vld [vmem:[%s2] sm:$0xff]
    %v31 = vld [vmem:[%s2 + $0x8] sm:$0xff]
    %v32 = vld [vmem:[%s2 + $0x10] sm:$0xff]
    %v33 = vld [vmem:[%s2 + $0x18] sm:$0xff]
    %v34 = vld [vmem:[%s2 + $0x20] sm:$0xff]
    %v35 = vld [vmem:[%s2 + $0x28] sm:$0xff]
    %v36 = vld [vmem:[%s2 + $0x30] sm:$0xff]
    %v37 = vld [vmem:[%s2 + $0x38] sm:$0xff]
    %v38 = vld [vmem:[%s2 + $0x40] sm:$0xff]
    %v39 = vld [vmem:[%s2 + $0x48] sm:$0xff]
    %v40 = vld [vmem:[%s2 + $0x50] sm:$0xff]
    %v41 = vld [vmem:[%s2 + $0x58] sm:$0xff]
    %v42 = vld [vmem:[%s2 + $0x60] sm:$0xff]
    %v43 = vld [vmem:[%s2 + $0x68] sm:$0xff]
    %v44 = vld [vmem:[%s2 + $0x70] sm:$0xff]
    %v45 = vld [vmem:[%s2 + $0x78] sm:$0xff]
    %v46 = vld [vmem:[%s2 + $0x80] sm:$0xff]
    %v47 = vld [vmem:[%s2 + $0x88] sm:$0xff]
    %v48 = vld [vmem:[%s2 + $0x90] sm:$0xff]
    %v49 = vld [vmem:[%s2 + $0x98] sm:$0xff]
    %v50 = vld [vmem:[%s2 + $0xa0] sm:$0xff]
    %v51 = vld [vmem:[%s2 + $0xa8] sm:$0xff]
    %v52 = vld [vmem:[%s2 + $0xb0] sm:$0xff]
    %v53 = vld [vmem:[%s2 + $0xb8] sm:$0xff]
    %v54 = vld [vmem:[%s2 + $0xc0] sm:$0xff]
    %v55 = vld [vmem:[%s2 + $0xc8] sm:$0xff]
    %v56 = vld [vmem:[%s2 + $0xd0] sm:$0xff]
    %v57 = vld [vmem:[%s2 + $0xd8] sm:$0xff]
    %v58 = vld [vmem:[%s2 + $0xe0] sm:$0xff]
    %v59 = vld [vmem:[%s2 + $0xe8] sm:$0xff]
    %v60 = vld [vmem:[%s2 + $0xf0] sm:$0xff]
    %v61 = vld [vmem:[%s2 + $0xf8] sm:$0xff]
    %v62 = vld [vmem:[%s2 + $0x100] sm:$0xff]
    %v63 = vld [vmem:[%s2 + $0x108] sm:$0xff]
    %v64 = vld [vmem:[%s2 + $0x110] sm:$0xff]
    %v65 = vld [vmem:[%s2 + $0x118] sm:$0xff]
    %v66 = vld [vmem:[%s2 + $0x120] sm:$0xff]
    %v67 = vld [vmem:[%s2 + $0x128] sm:$0xff]
    %v68 = vld [vmem:[%s2 + $0x130] sm:$0xff]
    %v69 = vld [vmem:[%s2 + $0x138] sm:$0xff]
    %v70 = vld [vmem:[%s2 + $0x140] sm:$0xff]
    %v71 = vld [vmem:[%s2 + $0x148] sm:$0xff]
    %v72 = vld [vmem:[%s2 + $0x150] sm:$0xff]
    %v73 = vld [vmem:[%s2 + $0x158] sm:$0xff]
    %v74 = vld [vmem:[%s2 + $0x160] sm:$0xff]
    %v75 = vld [vmem:[%s2 + $0x168] sm:$0xff]
    %v76 = vld [vmem:[%s2 + $0x170] sm:$0xff]
    %v77 = vld [vmem:[%s2 + $0x178] sm:$0xff]
    %v78 = vld [vmem:[%s2 + $0x180] sm:$0xff]
    %v79 = vld [vmem:[%s2 + $0x188] sm:$0xff]
    %v80 = vld [vmem:[%s2 + $0x190] sm:$0xff]
    %v81 = vld [vmem:[%s2 + $0x198] sm:$0xff]
    %v82 = vld [vmem:[%s2 + $0x1a0] sm:$0xff]
    %v83 = vld [vmem:[%s2 + $0x1a8] sm:$0xff]
    %v84 = vld [vmem:[%s2 + $0x1b0] sm:$0xff]
    %v85 = vld [vmem:[%s2 + $0x1b8] sm:$0xff]
    %v86 = vld [vmem:[%s2 + $0x1c0] sm:$0xff]
    %v87 = vld [vmem:[%s2 + $0x1c8] sm:$0xff]
    %v88 = vld [vmem:[%s2 + $0x1d0] sm:$0xff]
    %v89 = vld [vmem:[%s2 + $0x1d8] sm:$0xff]
    %v90 = vld [vmem:[%s2 + $0x1e0] sm:$0xff]
    %v91 = vld [vmem:[%s2 + $0x1e8] sm:$0xff]
    %v92 = vld [vmem:[%s2 + $0x1f0] sm:$0xff]
    %v93 = vld [vmem:[%s2 + $0x1f8] sm:$0xff]
    %v94 = vld [vmem:[%s2 + $0x200] sm:$0xff]
    %v95 = vld [vmem:[%s2 + $0x208] sm:$0xff]
    %v96 = vld [vmem:[%s2 + $0x210] sm:$0xff]
    %v97 = vld [vmem:[%s2 + $0x218] sm:$0xff]
    %v98 = vld [vmem:[%s2 + $0x220] sm:$0xff]
    %v99 = vld [vmem:[%s2 + $0x228] sm:$0xff]
    %v100 = vld [vmem:[%s2 + $0x230] sm:$0xff]
    %v101 = vld [vmem:[%s2 + $0x238] sm:$0xff]
    %v102 = vld [vmem:[%s2 + $0x240] sm:$0xff]
    %v103 = vld [vmem:[%s2 + $0x248] sm:$0xff]
    %v104 = vld [vmem:[%s2 + $0x250] sm:$0xff]
    %v105 = vld [vmem:[%s2 + $0x258] sm:$0xff]
    %v106 = vld [vmem:[%s2 + $0x260] sm:$0xff]
    %v107 = vld [vmem:[%s2 + $0x268] sm:$0xff]
    %v108 = vld [vmem:[%s2 + $0x270] sm:$0xff]
    %v109 = vld [vmem:[%s2 + $0x278] sm:$0xff]
    %v110 = vld [vmem:[%s2 + $0x280] sm:$0xff]
    %v111 = vld [vmem:[%s2 + $0x288] sm:$0xff]
    %v112 = vld [vmem:[%s2 + $0x290] sm:$0xff]
    %v113 = vld [vmem:[%s2 + $0x298] sm:$0xff]
    %v114 = vld [vmem:[%s2 + $0x2a0] sm:$0xff]
    %v115 = vld [vmem:[%s2 + $0x2a8] sm:$0xff]
    %v116 = vld [vmem:[%s2 + $0x2b0] sm:$0xff]
    %v117 = vld [vmem:[%s2 + $0x2b8] sm:$0xff]
    %v118 = vld [vmem:[%s2 + $0x2c0] sm:$0xff]
    %v119 = vld [vmem:[%s2 + $0x2c8] sm:$0xff]
    %v120 = vld [vmem:[%s2 + $0x2d0] sm:$0xff]
    %v121 = vld [vmem:[%s2 + $0x2d8] sm:$0xff]
    %v122 = vld [vmem:[%s2 + $0x2e0] sm:$0xff]
    %v123 = vld [vmem:[%s2 + $0x2e8] sm:$0xff]
    %v124 = vld [vmem:[%s2 + $0x2f0] sm:$0xff]
    %v125 = vld [vmem:[%s2 + $0x2f8] sm:$0xff]
    %v129 = vunpack.c.l.b16 %v27
    %v130 = vunpack.c.h.b16 %v27
    %v131 = vunpack.c.l.b16 %v28
    %v132 = vunpack.c.h.b16 %v28
    %v133 = vunpack.c.l.b16 %v29
    %v134 = vunpack.c.h.b16 %v29
    %v135 = vpack.c.b16 %v129, %v129
    %v136 = vpack.c.b16 %v130, %v130
    %v137 = vpack.c.b16 %v131, %v131
    %v138 = vpack.c.b16 %v132, %v132
    %v139 = vpack.c.b16 %v133, %v133
    %v140 = vpack.c.b16 %v134, %v134
    %v243 = vunpack.c.l.b16 %v30
    %v244 = vunpack.c.h.b16 %v30
    %v245 = vunpack.c.l.b16 %v31
    %v246 = vunpack.c.h.b16 %v31
    %v247 = vunpack.c.l.b16 %v32
    %v248 = vunpack.c.h.b16 %v32
    %v249 = vunpack.c.l.b16 %v33
    %v250 = vunpack.c.h.b16 %v33
    %v251 = vunpack.c.l.b16 %v34
    %v252 = vunpack.c.h.b16 %v34
    %v253 = vunpack.c.l.b16 %v35
    %v254 = vunpack.c.h.b16 %v35
    %v255 = vunpack.c.l.b16 %v36
    %v256 = vunpack.c.h.b16 %v36
    %v257 = vunpack.c.l.b16 %v37
    %v258 = vunpack.c.h.b16 %v37
    %v259 = vunpack.c.l.b16 %v38
    %v260 = vunpack.c.h.b16 %v38
    %v261 = vunpack.c.l.b16 %v39
    %v262 = vunpack.c.h.b16 %v39
    %v263 = vunpack.c.l.b16 %v40
    %v264 = vunpack.c.h.b16 %v40
    %v265 = vunpack.c.l.b16 %v41
    %v266 = vunpack.c.h.b16 %v41
    %v267 = vunpack.c.l.b16 %v42
    %v268 = vunpack.c.h.b16 %v42
    %v269 = vunpack.c.l.b16 %v43
    %v270 = vunpack.c.h.b16 %v43
    %v271 = vunpack.c.l.b16 %v44
    %v272 = vunpack.c.h.b16 %v44
    %v273 = vunpack.c.l.b16 %v45
    %v274 = vunpack.c.h.b16 %v45
    %v275 = vunpack.c.l.b16 %v46
    %v276 = vunpack.c.h.b16 %v46
    %v277 = vunpack.c.l.b16 %v47
    %v278 = vunpack.c.h.b16 %v47
    %v279 = vunpack.c.l.b16 %v48
    %v280 = vunpack.c.h.b16 %v48
    %v281 = vunpack.c.l.b16 %v49
    %v282 = vunpack.c.h.b16 %v49
    %v283 = vunpack.c.l.b16 %v50
    %v284 = vunpack.c.h.b16 %v50
    %v285 = vunpack.c.l.b16 %v51
    %v286 = vunpack.c.h.b16 %v51
    %v287 = vunpack.c.l.b16 %v52
    %v288 = vunpack.c.h.b16 %v52
    %v289 = vunpack.c.l.b16 %v53
    %v290 = vunpack.c.h.b16 %v53
    %v291 = vunpack.c.l.b16 %v54
    %v292 = vunpack.c.h.b16 %v54
    %v293 = vunpack.c.l.b16 %v55
    %v294 = vunpack.c.h.b16 %v55
    %v295 = vunpack.c.l.b16 %v56
    %v296 = vunpack.c.h.b16 %v56
    %v297 = vunpack.c.l.b16 %v57
    %v298 = vunpack.c.h.b16 %v57
    %v299 = vunpack.c.l.b16 %v58
    %v300 = vunpack.c.h.b16 %v58
    %v301 = vunpack.c.l.b16 %v59
    %v302 = vunpack.c.h.b16 %v59
    %v303 = vunpack.c.l.b16 %v60
    %v304 = vunpack.c.h.b16 %v60
    %v305 = vunpack.c.l.b16 %v61
    %v306 = vunpack.c.h.b16 %v61
    %v307 = vunpack.c.l.b16 %v62
    %v308 = vunpack.c.h.b16 %v62
    %v309 = vunpack.c.l.b16 %v63
    %v310 = vunpack.c.h.b16 %v63
    %v311 = vunpack.c.l.b16 %v64
    %v312 = vunpack.c.h.b16 %v64
    %v313 = vunpack.c.l.b16 %v65
    %v314 = vunpack.c.h.b16 %v65
    %v315 = vunpack.c.l.b16 %v66
    %v316 = vunpack.c.h.b16 %v66
    %v317 = vunpack.c.l.b16 %v67
    %v318 = vunpack.c.h.b16 %v67
    %v319 = vunpack.c.l.b16 %v68
    %v320 = vunpack.c.h.b16 %v68
    %v321 = vunpack.c.l.b16 %v69
    %v322 = vunpack.c.h.b16 %v69
    %v323 = vunpack.c.l.b16 %v70
    %v324 = vunpack.c.h.b16 %v70
    %v325 = vunpack.c.l.b16 %v71
    %v326 = vunpack.c.h.b16 %v71
    %v327 = vunpack.c.l.b16 %v72
    %v328 = vunpack.c.h.b16 %v72
    %v329 = vunpack.c.l.b16 %v73
    %v330 = vunpack.c.h.b16 %v73
    %v331 = vunpack.c.l.b16 %v74
    %v332 = vunpack.c.h.b16 %v74
    %v333 = vunpack.c.l.b16 %v75
    %v334 = vunpack.c.h.b16 %v75
    %v335 = vunpack.c.l.b16 %v76
    %v336 = vunpack.c.h.b16 %v76
    %v337 = vunpack.c.l.b16 %v77
    %v338 = vunpack.c.h.b16 %v77
    %v339 = vunpack.c.l.b16 %v78
    %v340 = vunpack.c.h.b16 %v78
    %v341 = vunpack.c.l.b16 %v79
    %v342 = vunpack.c.h.b16 %v79
    %v343 = vunpack.c.l.b16 %v80
    %v344 = vunpack.c.h.b16 %v80
    %v345 = vunpack.c.l.b16 %v81
    %v346 = vunpack.c.h.b16 %v81
    %v347 = vunpack.c.l.b16 %v82
    %v348 = vunpack.c.h.b16 %v82
    %v349 = vunpack.c.l.b16 %v83
    %v350 = vunpack.c.h.b16 %v83
    %v351 = vunpack.c.l.b16 %v84
    %v352 = vunpack.c.h.b16 %v84
    %v353 = vunpack.c.l.b16 %v85
    %v354 = vunpack.c.h.b16 %v85
    %v355 = vunpack.c.l.b16 %v86
    %v356 = vunpack.c.h.b16 %v86
    %v357 = vunpack.c.l.b16 %v87
    %v358 = vunpack.c.h.b16 %v87
    %v359 = vunpack.c.l.b16 %v88
    %v360 = vunpack.c.h.b16 %v88
    %v361 = vunpack.c.l.b16 %v89
    %v362 = vunpack.c.h.b16 %v89
    %v363 = vunpack.c.l.b16 %v90
    %v364 = vunpack.c.h.b16 %v90
    %v365 = vunpack.c.l.b16 %v91
    %v366 = vunpack.c.h.b16 %v91
    %v367 = vunpack.c.l.b16 %v92
    %v368 = vunpack.c.h.b16 %v92
    %v369 = vunpack.c.l.b16 %v93
    %v370 = vunpack.c.h.b16 %v93
    %v371 = vunpack.c.l.b16 %v94
    %v372 = vunpack.c.h.b16 %v94
    %v373 = vunpack.c.l.b16 %v95
    %v374 = vunpack.c.h.b16 %v95
    %v375 = vunpack.c.l.b16 %v96
    %v376 = vunpack.c.h.b16 %v96
    %v377 = vunpack.c.l.b16 %v97
    %v378 = vunpack.c.h.b16 %v97
    %v379 = vunpack.c.l.b16 %v98
    %v380 = vunpack.c.h.b16 %v98
    %v381 = vunpack.c.l.b16 %v99
    %v382 = vunpack.c.h.b16 %v99
    %v383 = vunpack.c.l.b16 %v100
    %v384 = vunpack.c.h.b16 %v100
    %v385 = vunpack.c.l.b16 %v101
    %v386 = vunpack.c.h.b16 %v101
    %v387 = vunpack.c.l.b16 %v102
    %v388 = vunpack.c.h.b16 %v102
    %v389 = vunpack.c.l.b16 %v103
    %v390 = vunpack.c.h.b16 %v103
    %v391 = vunpack.c.l.b16 %v104
    %v392 = vunpack.c.h.b16 %v104
    %v393 = vunpack.c.l.b16 %v105
    %v394 = vunpack.c.h.b16 %v105
    %v395 = vunpack.c.l.b16 %v106
    %v396 = vunpack.c.h.b16 %v106
    %v397 = vunpack.c.l.b16 %v107
    %v398 = vunpack.c.h.b16 %v107
    %v399 = vunpack.c.l.b16 %v108
    %v400 = vunpack.c.h.b16 %v108
    %v401 = vunpack.c.l.b16 %v109
    %v402 = vunpack.c.h.b16 %v109
    %v403 = vunpack.c.l.b16 %v110
    %v404 = vunpack.c.h.b16 %v110
    %v405 = vunpack.c.l.b16 %v111
    %v406 = vunpack.c.h.b16 %v111
    %v407 = vunpack.c.l.b16 %v112
    %v408 = vunpack.c.h.b16 %v112
    %v409 = vunpack.c.l.b16 %v113
    %v410 = vunpack.c.h.b16 %v113
    %v411 = vunpack.c.l.b16 %v114
    %v412 = vunpack.c.h.b16 %v114
    %v413 = vunpack.c.l.b16 %v115
    %v414 = vunpack.c.h.b16 %v115
    %v415 = vunpack.c.l.b16 %v116
    %v416 = vunpack.c.h.b16 %v116
    %v417 = vunpack.c.l.b16 %v117
    %v418 = vunpack.c.h.b16 %v117
    %v419 = vunpack.c.l.b16 %v118
    %v420 = vunpack.c.h.b16 %v118
    %v421 = vunpack.c.l.b16 %v119
    %v422 = vunpack.c.h.b16 %v119
    %v423 = vunpack.c.l.b16 %v120
    %v424 = vunpack.c.h.b16 %v120
    %v425 = vunpack.c.l.b16 %v121
    %v426 = vunpack.c.h.b16 %v121
    %v427 = vunpack.c.l.b16 %v122
    %v428 = vunpack.c.h.b16 %v122
    %v429 = vunpack.c.l.b16 %v123
    %v430 = vunpack.c.h.b16 %v123
    %v431 = vunpack.c.l.b16 %v124
    %v432 = vunpack.c.h.b16 %v124
    %v433 = vunpack.c.l.b16 %v125
    %v434 = vunpack.c.h.b16 %v125
    %v435 = vpack.c.b16 %v245, %v243
    %v436 = vpack.c.b16 %v246, %v244
    %v437 = vpack.c.b16 %v249, %v247
    %v438 = vpack.c.b16 %v250, %v248
    %v439 = vpack.c.b16 %v253, %v251
    %v440 = vpack.c.b16 %v254, %v252
    %v441 = vpack.c.b16 %v257, %v255
    %v442 = vpack.c.b16 %v258, %v256
    %v443 = vpack.c.b16 %v261, %v259
    %v444 = vpack.c.b16 %v262, %v260
    %v445 = vpack.c.b16 %v265, %v263
    %v446 = vpack.c.b16 %v266, %v264
    %v447 = vpack.c.b16 %v269, %v267
    %v448 = vpack.c.b16 %v270, %v268
    %v449 = vpack.c.b16 %v273, %v271
    %v450 = vpack.c.b16 %v274, %v272
    %v451 = vpack.c.b16 %v277, %v275
    %v452 = vpack.c.b16 %v278, %v276
    %v453 = vpack.c.b16 %v281, %v279
    %v454 = vpack.c.b16 %v282, %v280
    %v455 = vpack.c.b16 %v285, %v283
    %v456 = vpack.c.b16 %v286, %v284
    %v457 = vpack.c.b16 %v289, %v287
    %v458 = vpack.c.b16 %v290, %v288
    %v459 = vpack.c.b16 %v293, %v291
    %v460 = vpack.c.b16 %v294, %v292
    %v461 = vpack.c.b16 %v297, %v295
    %v462 = vpack.c.b16 %v298, %v296
    %v463 = vpack.c.b16 %v301, %v299
    %v464 = vpack.c.b16 %v302, %v300
    %v465 = vpack.c.b16 %v305, %v303
    %v466 = vpack.c.b16 %v306, %v304
    %v467 = vpack.c.b16 %v309, %v307
    %v468 = vpack.c.b16 %v310, %v308
    %v469 = vpack.c.b16 %v313, %v311
    %v470 = vpack.c.b16 %v314, %v312
    %v471 = vpack.c.b16 %v317, %v315
    %v472 = vpack.c.b16 %v318, %v316
    %v473 = vpack.c.b16 %v321, %v319
    %v474 = vpack.c.b16 %v322, %v320
    %v475 = vpack.c.b16 %v325, %v323
    %v476 = vpack.c.b16 %v326, %v324
    %v477 = vpack.c.b16 %v329, %v327
    %v478 = vpack.c.b16 %v330, %v328
    %v479 = vpack.c.b16 %v333, %v331
    %v480 = vpack.c.b16 %v334, %v332
    %v481 = vpack.c.b16 %v337, %v335
    %v482 = vpack.c.b16 %v338, %v336
    %v483 = vpack.c.b16 %v341, %v339
    %v484 = vpack.c.b16 %v342, %v340
    %v485 = vpack.c.b16 %v345, %v343
    %v486 = vpack.c.b16 %v346, %v344
    %v487 = vpack.c.b16 %v349, %v347
    %v488 = vpack.c.b16 %v350, %v348
    %v489 = vpack.c.b16 %v353, %v351
    %v490 = vpack.c.b16 %v354, %v352
    %v491 = vpack.c.b16 %v357, %v355
    %v492 = vpack.c.b16 %v358, %v356
    %v493 = vpack.c.b16 %v361, %v359
    %v494 = vpack.c.b16 %v362, %v360
    %v495 = vpack.c.b16 %v365, %v363
    %v496 = vpack.c.b16 %v366, %v364
    %v497 = vpack.c.b16 %v369, %v367
    %v498 = vpack.c.b16 %v370, %v368
    %v499 = vpack.c.b16 %v373, %v371
    %v500 = vpack.c.b16 %v374, %v372
    %v501 = vpack.c.b16 %v377, %v375
    %v502 = vpack.c.b16 %v378, %v376
    %v503 = vpack.c.b16 %v381, %v379
    %v504 = vpack.c.b16 %v382, %v380
    %v505 = vpack.c.b16 %v385, %v383
    %v506 = vpack.c.b16 %v386, %v384
    %v507 = vpack.c.b16 %v389, %v387
    %v508 = vpack.c.b16 %v390, %v388
    %v509 = vpack.c.b16 %v393, %v391
    %v510 = vpack.c.b16 %v394, %v392
    %v511 = vpack.c.b16 %v397, %v395
    %v512 = vpack.c.b16 %v398, %v396
    %v513 = vpack.c.b16 %v401, %v399
    %v514 = vpack.c.b16 %v402, %v400
    %v515 = vpack.c.b16 %v405, %v403
    %v516 = vpack.c.b16 %v406, %v404
    %v517 = vpack.c.b16 %v409, %v407
    %v518 = vpack.c.b16 %v410, %v408
    %v519 = vpack.c.b16 %v413, %v411
    %v520 = vpack.c.b16 %v414, %v412
    %v521 = vpack.c.b16 %v417, %v415
    %v522 = vpack.c.b16 %v418, %v416
    %v523 = vpack.c.b16 %v421, %v419
    %v524 = vpack.c.b16 %v422, %v420
    %v525 = vpack.c.b16 %v425, %v423
    %v526 = vpack.c.b16 %v426, %v424
    %v527 = vpack.c.b16 %v429, %v427
    %v528 = vpack.c.b16 %v430, %v428
    %v529 = vpack.c.b16 %v433, %v431
    %v530 = vpack.c.b16 %v434, %v432
    %627 = vmatprep.subr.bf16.mxu0 %v436
    %628 = vmatpush1.bf16.msra.mxu0 %v435
    %629 = vmatprep.subr.bf16.mxu0 %v438
    %630 = vmatpush1.bf16.msra.mxu0 %v437
    %631 = vmatprep.subr.bf16.mxu0 %v440
    %632 = vmatpush1.bf16.msra.mxu0 %v439
    %633 = vmatprep.subr.bf16.mxu0 %v442
    %634 = vmatpush1.bf16.msra.mxu0 %v441
    %635 = vmatprep.subr.bf16.mxu0 %v444
    %636 = vmatpush1.bf16.msra.mxu0 %v443
    %637 = vmatprep.subr.bf16.mxu0 %v446
    %638 = vmatpush1.bf16.msra.mxu0 %v445
    %639 = vmatprep.subr.bf16.mxu0 %v448
    %640 = vmatpush1.bf16.msra.mxu0 %v447
    %641 = vmatprep.subr.bf16.mxu0 %v450
    %642 = vmatpush1.bf16.msra.mxu0 %v449
    %643 = vmatprep.subr.bf16.mxu0 %v452
    %644 = vmatpush1.bf16.msra.mxu0 %v451
    %645 = vmatprep.subr.bf16.mxu0 %v454
    %646 = vmatpush1.bf16.msra.mxu0 %v453
    %647 = vmatprep.subr.bf16.mxu0 %v456
    %648 = vmatpush1.bf16.msra.mxu0 %v455
    %649 = vmatprep.subr.bf16.mxu0 %v458
    %650 = vmatpush1.bf16.msra.mxu0 %v457
    %651 = vmatprep.subr.bf16.mxu0 %v460
    %652 = vmatpush1.bf16.msra.mxu0 %v459
    %653 = vmatprep.subr.bf16.mxu0 %v462
    %654 = vmatpush1.bf16.msra.mxu0 %v461
    %655 = vmatprep.subr.bf16.mxu0 %v464
    %656 = vmatpush1.bf16.msra.mxu0 %v463
    %657 = vmatprep.subr.bf16.mxu0 %v466
    %658 = vmatpush1.bf16.msra.mxu0 %v465
    %659 = vmatprep.mubr.bf16.mxu0 %v136
    %660 = vmatmul.mubr.bf16.gmra.mrb[0].mxu0 %v135
    %v661 = vpop.f32.mrb[0].mxu0
    %v662 = vadd.f32 0.0, %v661
    %v663 = vpop.f32.mrb[0].mxu0
    %v664 = vadd.f32 0.0, %v663
    %v665 = vpop.f32.mrb[0].mxu0
    %v666 = vpop.f32.mrb[0].mxu0
    %667 = vdwg.mxu0
    %668 = vmatprep.subr.bf16.mxu0 %v468
    %669 = vmatpush1.bf16.msra.mxu0 %v467
    %670 = vmatprep.subr.bf16.mxu0 %v470
    %671 = vmatpush1.bf16.msra.mxu0 %v469
    %672 = vmatprep.subr.bf16.mxu0 %v472
    %673 = vmatpush1.bf16.msra.mxu0 %v471
    %674 = vmatprep.subr.bf16.mxu0 %v474
    %675 = vmatpush1.bf16.msra.mxu0 %v473
    %676 = vmatprep.subr.bf16.mxu0 %v476
    %677 = vmatpush1.bf16.msra.mxu0 %v475
    %678 = vmatprep.subr.bf16.mxu0 %v478
    %679 = vmatpush1.bf16.msra.mxu0 %v477
    %680 = vmatprep.subr.bf16.mxu0 %v480
    %681 = vmatpush1.bf16.msra.mxu0 %v479
    %682 = vmatprep.subr.bf16.mxu0 %v482
    %683 = vmatpush1.bf16.msra.mxu0 %v481
    %684 = vmatprep.subr.bf16.mxu0 %v484
    %685 = vmatpush1.bf16.msra.mxu0 %v483
    %686 = vmatprep.subr.bf16.mxu0 %v486
    %687 = vmatpush1.bf16.msra.mxu0 %v485
    %688 = vmatprep.subr.bf16.mxu0 %v488
    %689 = vmatpush1.bf16.msra.mxu0 %v487
    %690 = vmatprep.subr.bf16.mxu0 %v490
    %691 = vmatpush1.bf16.msra.mxu0 %v489
    %692 = vmatprep.subr.bf16.mxu0 %v492
    %693 = vmatpush1.bf16.msra.mxu0 %v491
    %694 = vmatprep.subr.bf16.mxu0 %v494
    %695 = vmatpush1.bf16.msra.mxu0 %v493
    %696 = vmatprep.subr.bf16.mxu0 %v496
    %697 = vmatpush1.bf16.msra.mxu0 %v495
    %698 = vmatprep.subr.bf16.mxu0 %v498
    %699 = vmatpush1.bf16.msra.mxu0 %v497
    %700 = vmatprep.mubr.bf16.mxu0 %v138
    %701 = vmatmul.mubr.bf16.gmra.mrb[0].mxu0 %v137
    %v702 = vpop.f32.mrb[0].mxu0
    %v703 = vadd.f32 %v662, %v702
    %v704 = vpop.f32.mrb[0].mxu0
    %v705 = vadd.f32 %v664, %v704
    %v706 = vpop.f32.mrb[0].mxu0
    %v707 = vpop.f32.mrb[0].mxu0
    %708 = vdwg.mxu0
    %709 = vmatprep.subr.bf16.mxu0 %v500
    %710 = vmatpush1.bf16.msra.mxu0 %v499
    %711 = vmatprep.subr.bf16.mxu0 %v502
    %712 = vmatpush1.bf16.msra.mxu0 %v501
    %713 = vmatprep.subr.bf16.mxu0 %v504
    %714 = vmatpush1.bf16.msra.mxu0 %v503
    %715 = vmatprep.subr.bf16.mxu0 %v506
    %716 = vmatpush1.bf16.msra.mxu0 %v505
    %717 = vmatprep.subr.bf16.mxu0 %v508
    %718 = vmatpush1.bf16.msra.mxu0 %v507
    %719 = vmatprep.subr.bf16.mxu0 %v510
    %720 = vmatpush1.bf16.msra.mxu0 %v509
    %721 = vmatprep.subr.bf16.mxu0 %v512
    %722 = vmatpush1.bf16.msra.mxu0 %v511
    %723 = vmatprep.subr.bf16.mxu0 %v514
    %724 = vmatpush1.bf16.msra.mxu0 %v513
    %725 = vmatprep.subr.bf16.mxu0 %v516
    %726 = vmatpush1.bf16.msra.mxu0 %v515
    %727 = vmatprep.subr.bf16.mxu0 %v518
    %728 = vmatpush1.bf16.msra.mxu0 %v517
    %729 = vmatprep.subr.bf16.mxu0 %v520
    %730 = vmatpush1.bf16.msra.mxu0 %v519
    %731 = vmatprep.subr.bf16.mxu0 %v522
    %732 = vmatpush1.bf16.msra.mxu0 %v521
    %733 = vmatprep.subr.bf16.mxu0 %v524
    %734 = vmatpush1.bf16.msra.mxu0 %v523
    %735 = vmatprep.subr.bf16.mxu0 %v526
    %736 = vmatpush1.bf16.msra.mxu0 %v525
    %737 = vmatprep.subr.bf16.mxu0 %v528
    %738 = vmatpush1.bf16.msra.mxu0 %v527
    %739 = vmatprep.subr.bf16.mxu0 %v530
    %740 = vmatpush1.bf16.msra.mxu0 %v529
    %741 = vmatprep.mubr.bf16.mxu0 %v140
    %742 = vmatmul.mubr.bf16.gmra.mrb[0].mxu0 %v139
    %v743 = vpop.f32.mrb[0].mxu0
    %v744 = vadd.f32 %v703, %v743
    %v745 = vpop.f32.mrb[0].mxu0
    %v746 = vadd.f32 %v705, %v745
    %v747 = vpop.f32.mrb[0].mxu0
    %v748 = vpop.f32.mrb[0].mxu0
    %749 = vdwg.mxu0
    %v750 = vadd.f32 %v25, %v744
    %v751 = vadd.f32 %v26, %v746
    %752 = vst [vmem:[#allocation2] sm:$0xff] %v750
    %753 = vst [vmem:[#allocation2 + $0x8] sm:$0xff] %v751
    // Predicated region
    $region22: #{model_with_temperature_forward.1} parent=1 // pred_check
      %p754 = pneg %p19
    $region23: #{model_with_temperature_forward.1} parent=1 // pred_check_branch
      %756 = sbr.rel (%p754) target = $region25
    $region24: #{model_with_temperature_forward.1} parent=1 // pred_region
      %s757 = sld [smem:[#allocation3]]
      %v758 = vstv %s757
      %v759 = vrcp.pop %v758
      %s760 = vtos %v759
      %v761 = vld [vmem:[#allocation2] sm:$0xff]
      %v762 = vld [vmem:[#allocation2 + $0x8] sm:$0xff]
      %v763 = vld [vmem:[%s3] sm:$0x3]
      %v765 = vlaneseq
      %v766 = vshrl.u32 %v765, 7
      %v767 = vsub.s32 0, %v766
      %v768 = vrot.slane %v763, %v767
      %v769 = vlaneseq
      %v770 = vshrl.u32 %v769, 7
      %v771 = vsub.s32 1, %v770
      %v772 = vrot.slane %v763, %v771
      %v775 = vadd.f32 %v761, %v768
      %v776 = vadd.f32 %v762, %v772
      %v777 = vstv %s760
      %v778 = vmul.f32 %v775, %v777
      %v779 = vmul.f32 %v776, %v777
      %780 = vst [vmem:[#allocation4] sm:$0xff] %v778
      %781 = vst [vmem:[#allocation4 + $0x8] sm:$0xff] %v779
    $region25: #{model_with_temperature_forward.1} parent=1 // pred_fallthru
      _
    // Predicated region
    $region26: #{model_with_temperature_forward.1} parent=1 // pred_check
      _
    $region27: #{model_with_temperature_forward.1} parent=1 // pred_check_branch
      %783 = sbr.rel (0) target = $region29
    $region28: #{model_with_temperature_forward.1} parent=1 // pred_region
      %s785 = ssub.s32 256, 256
      %786 = vsyncadd [#allocation5], %s785
      %s788 = sshll.u32 [#allocation4], 4
      %s789 = int_to_ptr.vmem [resolvable:$true] %s788
      %791 = dma.vmem_to_hbm [thread:$0]  %s789, 256, %s4, [#allocation5]
    $region29: #{model_with_temperature_forward.1} parent=1 // pred_fallthru
      _
    // Predicated region
    $region30: #{model_with_temperature_forward.1} parent=1 // pred_check
      _
    $region31: #{model_with_temperature_forward.1} parent=1 // pred_check_branch
      %793 = sbr.rel (0) target = $region33
    $region32: #{model_with_temperature_forward.1} parent=1 // pred_region
      %794 = dma.done [#allocation5], 256
    $region33: #{model_with_temperature_forward.1} parent=1 // pred_fallthru
      _
    %795 = vsyncpa [#allocation5], 1

</llo_original>
